<compile_context>
chip_gen: v6e
topology: v6e:2x2x1
jax: 0.10.0
libtpu: 0.0.40
codegen_flags: <defaults>
</compile_context>

<pallas_src>
import jax
import jax.numpy as jnp
from jax import lax
from jax.experimental import pallas as pl
from jax.experimental.pallas import tpu as pltpu

H = 175            # hidden width from the module definition
H_PAD = 176        # padded to a sublane multiple of 8
LANES = 128        # inner lane-chunk width (one vreg of lanes)
MAX_TB = 65536     # cap on the batch tile (keeps VMEM small, DMAs >= 32 KiB)


def _round_up(n, m):
    return ((n + m - 1) // m) * m


def _choose_tile(batch):
    """Pick the batch tile first, then pad the batch up to a multiple of it."""
    b128 = _round_up(max(batch, 1), LANES)
    if b128 < 256:
        tb = b128                                         # one grid step
    else:
        tb = min(_round_up(pl.cdiv(b128, 2), LANES), MAX_TB)  # 2 balanced steps
    b_pad = _round_up(b128, tb)
    return tb, b_pad


def mlp_kernel(x_ref, w_ref, o_ref):
    # x_ref: (1, TB)          batch on lanes
    # w_ref: (4*H_PAD, 128)   [w1'; b1'; w2'; b2'] folded + lane-pre-broadcast
    # o_ref: (1, TB)
    w1 = w_ref.at[0 * H_PAD:1 * H_PAD, :]        # 0.5*w1          (H_PAD, 128)
    b1 = w_ref.at[1 * H_PAD:2 * H_PAD, :]        # 0.5*b1
    w2 = w_ref.at[2 * H_PAD:3 * H_PAD, :]        # 0.5*w2
    b2 = w_ref.at[3 * H_PAD:3 * H_PAD + 1, :]    # b2 + 0.5*sum(w2)   (1, 128)

    n_chunks = x_ref.shape[1] // LANES

    def chunk(c, carry):
        start = pl.multiple_of(c * LANES, LANES)
        x = x_ref[:, pl.ds(start, LANES)]                         # (1, LANES)
        # Folded network: out = sum_j w2'_j * tanh(w1'_j * x + b1'_j) + b2'
        acc = jnp.sum(w2[...] * jnp.tanh(w1[...] * x + b1[...]),
                      axis=0, keepdims=True) + b2[...]            # (1, LANES)
        o_ref[:, pl.ds(start, LANES)] = acc.astype(o_ref.dtype)
        return carry

    lax.fori_loop(0, n_chunks, chunk, 0, unroll=(n_chunks <= 8))


def prepare_params(params):
    """One-time host-side fold + pack (hoisted out of the forward call).

    Returns a single (4*H_PAD, 128) f32 array:
      rows [0:176)   = 0.5*w1   (zero-padded, lane-broadcast)
      rows [176:352) = 0.5*b1
      rows [352:528) = 0.5*w2
      rows [528:704) = b2 + 0.5*sum(w2)   (scalar replicated; kernel reads row 0)
    """
    w1 = params["w1"].reshape(H).astype(jnp.float32)
    b1 = params["b1"].reshape(H).astype(jnp.float32)
    w2 = params["w2"].reshape(H).astype(jnp.float32)
    b2 = params["b2"].reshape(()).astype(jnp.float32)

    w1f, b1f, w2f = 0.5 * w1, 0.5 * b1, 0.5 * w2
    b2f = b2 + 0.5 * jnp.sum(w2)          # sum over the real 175 entries only

    def section(v):  # (175,) -> (H_PAD, 128) zero-padded, lane-broadcast
        col = jnp.zeros((H_PAD, 1), jnp.float32).at[:H, 0].set(v)
        return jnp.broadcast_to(col, (H_PAD, LANES))

    packed = jnp.concatenate(
        [section(w1f), section(b1f), section(w2f),
         jnp.full((H_PAD, LANES), b2f, jnp.float32)],
        axis=0)                                              # (4*H_PAD, 128)
    return packed


@jax.jit
def model0_forward(x, packed_weights):
    """x: (B, 1) float32; packed_weights: output of prepare_params."""
    B = x.shape[0]
    tb, b_pad = _choose_tile(B)

    x_t = x.reshape(1, B).astype(jnp.float32)
    if b_pad != B:
        x_t = jnp.pad(x_t, ((0, 0), (0, b_pad - B)))

    grid = (b_pad // tb,)
    cost = pl.CostEstimate(
        flops=4 * H_PAD * b_pad,
        transcendentals=H_PAD * b_pad,
        bytes_accessed=8 * b_pad + 4 * packed_weights.size)

    out_t = pl.pallas_call(
        mlp_kernel,
        out_shape=jax.ShapeDtypeStruct((1, b_pad), jnp.float32),
        grid=grid,
        in_specs=[
            pl.BlockSpec((1, tb), lambda i: (0, i)),              # x (lane-dense)
            pl.BlockSpec((4 * H_PAD, LANES), lambda i: (0, 0)),   # packed weights
        ],
        out_specs=pl.BlockSpec((1, tb), lambda i: (0, i)),
        compiler_params=pltpu.CompilerParams(
            dimension_semantics=("parallel",)),
        cost_estimate=cost,
    )(x_t, packed_weights)

    return out_t[:, :B].reshape(B, 1)


def init_params(key):
    """Deterministic init mirroring nn.Linear (PyTorch-native (out, in) shapes)."""
    keys = jax.random.split(key, 4)

    def linear(kw, kb, fan_in, fan_out):
        bound = 1.0 / jnp.sqrt(float(fan_in))
        w = jax.random.uniform(kw, (fan_out, fan_in), jnp.float32, -bound, bound)
        b = jax.random.uniform(kb, (fan_out,), jnp.float32, -bound, bound)
        return w, b

    w1, b1 = linear(keys[0], keys[1], 1, H)     # (175, 1), (175,)
    w2, b2 = linear(keys[2], keys[3], H, 1)     # (1, 175), (1,)
    return {"w1": w1, "b1": b1, "w2": w2, "b2": b2}


def _reference(x, params):
    # Pure-JAX reference: PyTorch semantics x @ W.T + b.
    h1 = jax.nn.sigmoid(x @ params["w1"].T + params["b1"][None, :])
    return h1 @ params["w2"].T + params["b2"][None, :]


if __name__ == "__main__":
    key = jax.random.PRNGKey(0)
    pkey, k_small, k_mid, k_large = jax.random.split(key, 4)
    params = init_params(pkey)
    packed = prepare_params(params)            # hoisted one-time weight prep

    # Small batch (module-consistent shape (B, 1)) -> single grid step.
    B = 8
    x = jax.random.normal(k_small, (B, 1), dtype=jnp.float32)
    out = jax.block_until_ready(model0_forward(x, packed))
    ref = _reference(x, params)
    assert out.shape == (B, 1)
    assert jnp.allclose(out, ref, atol=1e-5), "mismatch vs reference (small batch)"

    # Awkward batch -> padding + 2 balanced grid steps.
    B2 = 640
    x2 = jax.random.normal(k_mid, (B2, 1), dtype=jnp.float32)
    out2 = jax.block_until_ready(model0_forward(x2, packed))
    ref2 = _reference(x2, params)
    assert out2.shape == (B2, 1)
    assert jnp.allclose(out2, ref2, atol=1e-5), "mismatch vs reference (B=640)"

    # Larger batch -> 2 balanced steps with multi-chunk inner loop.
    B3 = 1536
    x3 = jax.random.normal(k_large, (B3, 1), dtype=jnp.float32)
    out3 = jax.block_until_ready(model0_forward(x3, packed))
    ref3 = _reference(x3, params)
    assert out3.shape == (B3, 1)
    assert jnp.allclose(out3, ref3, atol=1e-5), "mismatch vs reference (B=1536)"

    print("KERNEL_OK")
</pallas_src>

<mosaic_0001>
module attributes {stable_mosaic.version = 11 : i64} {
  func.func @mlp_kernel(%arg0: i32, %arg1: memref<1x128xf32, #tpu.memory_space<vmem>>, %arg2: memref<704x128xf32, #tpu.memory_space<vmem>>, %arg3: memref<1x128xf32, #tpu.memory_space<vmem>>) attributes {dimension_semantics = [#tpu.dimension_semantics<parallel>], iteration_bounds = array<i64: 1>, scalar_prefetch = 0 : i64, scratch_operands = 0 : i64, tpu.core_type = #tpu.core_type<tc>, window_params = [{transform_indices = @transform_0, window_bounds = array<i64: 1, 128>}, {pipeline_mode = #tpu.pipeline_mode<synchronous>, transform_indices = @transform_1, window_bounds = array<i64: 704, 128>}, {transform_indices = @transform_2, window_bounds = array<i64: 1, 128>}]} {
    %c0_i32 = arith.constant 0 : i32
    %c128_i32 = arith.constant 128 : i32
    %0 = arith.muli %c0_i32, %c128_i32 : i32
    %1 = tpu.assume_multiple %0, 128 : i32
    %c0 = arith.constant 0 : index
    %2 = arith.index_cast %1 : i32 to index
    %3 = vector.load %arg1[%c0, %2] : memref<1x128xf32, #tpu.memory_space<vmem>>, vector<1x128xf32>
    %c352 = arith.constant 352 : index
    %c0_0 = arith.constant 0 : index
    %4 = vector.load %arg2[%c352, %c0_0] : memref<704x128xf32, #tpu.memory_space<vmem>>, vector<176x128xf32>
    %c0_1 = arith.constant 0 : index
    %c0_2 = arith.constant 0 : index
    %5 = vector.load %arg2[%c0_1, %c0_2] : memref<704x128xf32, #tpu.memory_space<vmem>>, vector<176x128xf32>
    %6 = vector.broadcast %3 : vector<1x128xf32> to vector<176x128xf32>
    %7 = arith.mulf %5, %6 : vector<176x128xf32>
    %c176 = arith.constant 176 : index
    %c0_3 = arith.constant 0 : index
    %8 = vector.load %arg2[%c176, %c0_3] : memref<704x128xf32, #tpu.memory_space<vmem>>, vector<176x128xf32>
    %9 = arith.addf %7, %8 : vector<176x128xf32>
    %10 = math.tanh %9 : vector<176x128xf32>
    %11 = arith.mulf %4, %10 : vector<176x128xf32>
    %cst = arith.constant dense<0.000000e+00> : vector<128xf32>
    %12 = vector.multi_reduction <add>, %11, %cst [0] : vector<176x128xf32> to vector<128xf32>
    %13 = vector.shape_cast %12 : vector<128xf32> to vector<1x128xf32>
    %c528 = arith.constant 528 : index
    %c0_4 = arith.constant 0 : index
    %14 = vector.load %arg2[%c528, %c0_4] : memref<704x128xf32, #tpu.memory_space<vmem>>, vector<1x128xf32>
    %15 = arith.addf %13, %14 : vector<1x128xf32>
    %c0_5 = arith.constant 0 : index
    %16 = arith.index_cast %1 : i32 to index
    %17 = vector.load %arg3[%c0_5, %16] : memref<1x128xf32, #tpu.memory_space<vmem>>, vector<1x128xf32>
    tpu.vector_store %arg3[%c0_5, %16], %15 {strides = array<i32>} : memref<1x128xf32, #tpu.memory_space<vmem>>, vector<1x128xf32>,
    %c1_i32 = arith.constant 1 : i32
    return
  }
  func.func @transform_0(%arg0: i32) -> (i32, i32) {
    %c0_i32 = arith.constant 0 : i32
    %c0_i32_0 = arith.constant 0 : i32
    return %c0_i32, %arg0 : i32, i32
  }
  func.func @transform_1(%arg0: i32) -> (i32, i32) {
    %c0_i32 = arith.constant 0 : i32
    %c0_i32_0 = arith.constant 0 : i32
    %c0_i32_1 = arith.constant 0 : i32
    return %c0_i32, %c0_i32_0 : i32, i32
  }
  func.func @transform_2(%arg0: i32) -> (i32, i32) {
    %c0_i32 = arith.constant 0 : i32
    %c0_i32_0 = arith.constant 0 : i32
    return %c0_i32, %arg0 : i32, i32
  }
}

</mosaic_0001>

<llo_original>
// kernel: model0_forward.1
$region0: #{model0_forward.1}
  #allocation0 [shape = 'u32[]', space=smem, size = 0x4, offset = 0x4, fixed_abs, tag = 'smem constant byte address 0x4 - core index']
  #allocation1 [shape = 'u32[144,128]{1,0:T(1,128)}', space=vmem, size = 0x12000, scoped, tag = 'internal scratch']
  %s0 = inlined_call_operand.vmem [shape: f32[1,128], index: 0, kind: input, shape index: {}]
  %s1 = inlined_call_operand.hbm [shape: f32[704,128], index: 1, kind: input, shape index: {}]
  %s2 = inlined_call_operand.vmem [shape: f32[1,128], index: 2, kind: output, shape index: {}]
  %s3 = sld [smem:[#allocation0]]
  $region22: #{model0_forward.1} parent=0
    _
  %s5 = ssub.s32 1, %s3
  %s6 = scalar_select 0, %s5, %s3
  $region1: #{model0_forward.1} parent=0
    #allocation2 [shape = 'u8[360448]{0}', space=vmem, size = 0x58000, scoped, tag = 'input window, operand 1, single buffered']
    #allocation3 [shape = 's32[1]{0}', space=sflag, size = 0x4, scoped, tag = 'scoped memory for model0_forward.1']
    %7 = vsyncpa [#allocation3], 0
    // Predicated region
    $region2: #{model0_forward.1} parent=1 // pred_check
      _
    $region3: #{model0_forward.1} parent=1 // pred_check_branch
      %9 = sbr.rel (0) target = $region5
    $region4: #{model0_forward.1} parent=1 // pred_region
      _
    $region5: #{model0_forward.1} parent=1 // pred_fallthru
      _
    // Predicated region
    $region6: #{model0_forward.1} parent=1 // pred_check
      _
    $region7: #{model0_forward.1} parent=1 // pred_check_branch
      %11 = sbr.rel (0) target = $region9
    $region8: #{model0_forward.1} parent=1 // pred_region
      %s13 = ssub.s32 11264, 11264
      %14 = vsyncadd [#allocation3], %s13
      %s15 = sshll.u32 [#allocation2], 4
      %s16 = int_to_ptr.vmem [resolvable:$true] %s15
      %21 = dma.hbm_to_vmem [thread:$0]  %s1, 11264, %s16, [#allocation3], 128, 128, 8
    $region9: #{model0_forward.1} parent=1 // pred_fallthru
      _
    // Predicated region
    $region10: #{model0_forward.1} parent=1 // pred_check
      _
    $region11: #{model0_forward.1} parent=1 // pred_check_branch
      %23 = sbr.rel (0) target = $region13
    $region12: #{model0_forward.1} parent=1 // pred_region
      %24 = dma.done [#allocation3], 11264
    $region13: #{model0_forward.1} parent=1 // pred_fallthru
      _
    %v25 = vld [vmem:[%s0] sm:$0x1]
    %v26 = vld [vmem:[#allocation2 + $0x160] sm:$0xff]
    %v27 = vld [vmem:[#allocation2 + $0x168] sm:$0xff]
    %v28 = vld [vmem:[#allocation2 + $0x170] sm:$0xff]
    %v29 = vld [vmem:[#allocation2 + $0x178] sm:$0xff]
    %v30 = vld [vmem:[#allocation2 + $0x180] sm:$0xff]
    %v31 = vld [vmem:[#allocation2 + $0x188] sm:$0xff]
    %v32 = vld [vmem:[#allocation2 + $0x190] sm:$0xff]
    %v33 = vld [vmem:[#allocation2 + $0x198] sm:$0xff]
    %v34 = vld [vmem:[#allocation2 + $0x1a0] sm:$0xff]
    %v35 = vld [vmem:[#allocation2 + $0x1a8] sm:$0xff]
    %v36 = vld [vmem:[#allocation2 + $0x1b0] sm:$0xff]
    %v37 = vld [vmem:[#allocation2 + $0x1b8] sm:$0xff]
    %v38 = vld [vmem:[#allocation2 + $0x1c0] sm:$0xff]
    %v39 = vld [vmem:[#allocation2 + $0x1c8] sm:$0xff]
    %v40 = vld [vmem:[#allocation2 + $0x1d0] sm:$0xff]
    %v41 = vld [vmem:[#allocation2 + $0x1d8] sm:$0xff]
    %v42 = vld [vmem:[#allocation2 + $0x1e0] sm:$0xff]
    %v43 = vld [vmem:[#allocation2 + $0x1e8] sm:$0xff]
    %v44 = vld [vmem:[#allocation2 + $0x1f0] sm:$0xff]
    %v45 = vld [vmem:[#allocation2 + $0x1f8] sm:$0xff]
    %v46 = vld [vmem:[#allocation2 + $0x200] sm:$0xff]
    %v47 = vld [vmem:[#allocation2 + $0x208] sm:$0xff]
    %v48 = vld [vmem:[#allocation2] sm:$0xff]
    %v49 = vld [vmem:[#allocation2 + $0x8] sm:$0xff]
    %v50 = vld [vmem:[#allocation2 + $0x10] sm:$0xff]
    %v51 = vld [vmem:[#allocation2 + $0x18] sm:$0xff]
    %v52 = vld [vmem:[#allocation2 + $0x20] sm:$0xff]
    %v53 = vld [vmem:[#allocation2 + $0x28] sm:$0xff]
    %v54 = vld [vmem:[#allocation2 + $0x30] sm:$0xff]
    %v55 = vld [vmem:[#allocation2 + $0x38] sm:$0xff]
    %v56 = vld [vmem:[#allocation2 + $0x40] sm:$0xff]
    %v57 = vld [vmem:[#allocation2 + $0x48] sm:$0xff]
    %v58 = vld [vmem:[#allocation2 + $0x50] sm:$0xff]
    %v59 = vld [vmem:[#allocation2 + $0x58] sm:$0xff]
    %v60 = vld [vmem:[#allocation2 + $0x60] sm:$0xff]
    %v61 = vld [vmem:[#allocation2 + $0x68] sm:$0xff]
    %v62 = vld [vmem:[#allocation2 + $0x70] sm:$0xff]
    %v63 = vld [vmem:[#allocation2 + $0x78] sm:$0xff]
    %v64 = vld [vmem:[#allocation2 + $0x80] sm:$0xff]
    %v65 = vld [vmem:[#allocation2 + $0x88] sm:$0xff]
    %v66 = vld [vmem:[#allocation2 + $0x90] sm:$0xff]
    %v67 = vld [vmem:[#allocation2 + $0x98] sm:$0xff]
    %v68 = vld [vmem:[#allocation2 + $0xa0] sm:$0xff]
    %v69 = vld [vmem:[#allocation2 + $0xa8] sm:$0xff]
    %v71 = vlaneseq
    %v72 = vshrl.u32 %v71, 7
    %v73 = vsub.s32 0, %v72
    %v74 = vrot.slane %v25, %v73
    %v76 = vmul.f32 %v48, %v74
    %v77 = vmul.f32 %v49, %v74
    %v78 = vmul.f32 %v50, %v74
    %v79 = vmul.f32 %v51, %v74
    %v80 = vmul.f32 %v52, %v74
    %v81 = vmul.f32 %v53, %v74
    %v82 = vmul.f32 %v54, %v74
    %v83 = vmul.f32 %v55, %v74
    %v84 = vmul.f32 %v56, %v74
    %v85 = vmul.f32 %v57, %v74
    %v86 = vmul.f32 %v58, %v74
    %v87 = vmul.f32 %v59, %v74
    %v88 = vmul.f32 %v60, %v74
    %v89 = vmul.f32 %v61, %v74
    %v90 = vmul.f32 %v62, %v74
    %v91 = vmul.f32 %v63, %v74
    %v92 = vmul.f32 %v64, %v74
    %v93 = vmul.f32 %v65, %v74
    %v94 = vmul.f32 %v66, %v74
    %v95 = vmul.f32 %v67, %v74
    %v96 = vmul.f32 %v68, %v74
    %v97 = vmul.f32 %v69, %v74
    %v98 = vld [vmem:[#allocation2 + $0xb0] sm:$0xff]
    %v99 = vld [vmem:[#allocation2 + $0xb8] sm:$0xff]
    %v100 = vld [vmem:[#allocation2 + $0xc0] sm:$0xff]
    %v101 = vld [vmem:[#allocation2 + $0xc8] sm:$0xff]
    %v102 = vld [vmem:[#allocation2 + $0xd0] sm:$0xff]
    %v103 = vld [vmem:[#allocation2 + $0xd8] sm:$0xff]
    %v104 = vld [vmem:[#allocation2 + $0xe0] sm:$0xff]
    %v105 = vld [vmem:[#allocation2 + $0xe8] sm:$0xff]
    %v106 = vld [vmem:[#allocation2 + $0xf0] sm:$0xff]
    %v107 = vld [vmem:[#allocation2 + $0xf8] sm:$0xff]
    %v108 = vld [vmem:[#allocation2 + $0x100] sm:$0xff]
    %v109 = vld [vmem:[#allocation2 + $0x108] sm:$0xff]
    %v110 = vld [vmem:[#allocation2 + $0x110] sm:$0xff]
    %v111 = vld [vmem:[#allocation2 + $0x118] sm:$0xff]
    %v112 = vld [vmem:[#allocation2 + $0x120] sm:$0xff]
    %v113 = vld [vmem:[#allocation2 + $0x128] sm:$0xff]
    %v114 = vld [vmem:[#allocation2 + $0x130] sm:$0xff]
    %v115 = vld [vmem:[#allocation2 + $0x138] sm:$0xff]
    %v116 = vld [vmem:[#allocation2 + $0x140] sm:$0xff]
    %v117 = vld [vmem:[#allocation2 + $0x148] sm:$0xff]
    %v118 = vld [vmem:[#allocation2 + $0x150] sm:$0xff]
    %v119 = vld [vmem:[#allocation2 + $0x158] sm:$0xff]
    %v120 = vadd.f32 %v76, %v98
    %v121 = vadd.f32 %v77, %v99
    %v122 = vadd.f32 %v78, %v100
    %v123 = vadd.f32 %v79, %v101
    %v124 = vadd.f32 %v80, %v102
    %v125 = vadd.f32 %v81, %v103
    %v126 = vadd.f32 %v82, %v104
    %v127 = vadd.f32 %v83, %v105
    %v128 = vadd.f32 %v84, %v106
    %v129 = vadd.f32 %v85, %v107
    %v130 = vadd.f32 %v86, %v108
    %v131 = vadd.f32 %v87, %v109
    %v132 = vadd.f32 %v88, %v110
    %v133 = vadd.f32 %v89, %v111
    %v134 = vadd.f32 %v90, %v112
    %v135 = vadd.f32 %v91, %v113
    %v136 = vadd.f32 %v92, %v114
    %v137 = vadd.f32 %v93, %v115
    %v138 = vadd.f32 %v94, %v116
    %v139 = vadd.f32 %v95, %v117
    %v140 = vadd.f32 %v96, %v118
    %v141 = vadd.f32 %v97, %v119
    %v142 = vtanh.pop %v120
    %v143 = vtanh.pop %v121
    %v144 = vtanh.pop %v122
    %v145 = vtanh.pop %v123
    %v146 = vtanh.pop %v124
    %v147 = vtanh.pop %v125
    %v148 = vtanh.pop %v126
    %v149 = vtanh.pop %v127
    %v150 = vtanh.pop %v128
    %v151 = vtanh.pop %v129
    %v152 = vtanh.pop %v130
    %v153 = vtanh.pop %v131
    %v154 = vtanh.pop %v132
    %v155 = vtanh.pop %v133
    %v156 = vtanh.pop %v134
    %v157 = vtanh.pop %v135
    %v158 = vtanh.pop %v136
    %v159 = vtanh.pop %v137
    %v160 = vtanh.pop %v138
    %v161 = vtanh.pop %v139
    %v162 = vtanh.pop %v140
    %v163 = vtanh.pop %v141
    %v164 = vmul.f32 %v26, %v142
    %v165 = vmul.f32 %v27, %v143
    %v166 = vmul.f32 %v28, %v144
    %v167 = vmul.f32 %v29, %v145
    %v168 = vmul.f32 %v30, %v146
    %v169 = vmul.f32 %v31, %v147
    %v170 = vmul.f32 %v32, %v148
    %v171 = vmul.f32 %v33, %v149
    %v172 = vmul.f32 %v34, %v150
    %v173 = vmul.f32 %v35, %v151
    %v174 = vmul.f32 %v36, %v152
    %v175 = vmul.f32 %v37, %v153
    %v176 = vmul.f32 %v38, %v154
    %v177 = vmul.f32 %v39, %v155
    %v178 = vmul.f32 %v40, %v156
    %v179 = vmul.f32 %v41, %v157
    %v180 = vmul.f32 %v42, %v158
    %v181 = vmul.f32 %v43, %v159
    %v182 = vmul.f32 %v44, %v160
    %v183 = vmul.f32 %v45, %v161
    %v184 = vmul.f32 %v46, %v162
    %v185 = vmul.f32 %v47, %v163
    %v186 = vadd.f32 %v164, %v165
    %v187 = vadd.f32 %v186, %v166
    %v188 = vadd.f32 %v187, %v167
    %v189 = vadd.f32 %v188, %v168
    %v190 = vadd.f32 %v189, %v169
    %v191 = vadd.f32 %v190, %v170
    %v192 = vadd.f32 %v191, %v171
    %v193 = vadd.f32 %v192, %v172
    %v194 = vadd.f32 %v193, %v173
    %v195 = vadd.f32 %v194, %v174
    %v196 = vadd.f32 %v195, %v175
    %v197 = vadd.f32 %v196, %v176
    %v198 = vadd.f32 %v197, %v177
    %v199 = vadd.f32 %v198, %v178
    %v200 = vadd.f32 %v199, %v179
    %v201 = vadd.f32 %v200, %v180
    %v202 = vadd.f32 %v201, %v181
    %v203 = vadd.f32 %v202, %v182
    %v204 = vadd.f32 %v203, %v183
    %v205 = vadd.f32 %v204, %v184
    %v206 = vadd.f32 %v205, %v185
    %v207 = vrot.slane %v206, 4
    %v208 = vadd.f32 %v206, %v207
    %v209 = vrot.slane %v208, 2
    %v210 = vadd.f32 %v208, %v209
    %v211 = vrot.slane %v210, 1
    %v212 = vadd.f32 %v210, %v211
    %v213 = vld [vmem:[#allocation2 + $0x210] sm:$0x1]
    %v214 = vadd.f32 %v212, %v213
    %215 = vst [vmem:[%s2] sm:$0x1] %v214
    // Predicated region
    $region14: #{model0_forward.1} parent=1 // pred_check
      _
    $region15: #{model0_forward.1} parent=1 // pred_check_branch
      %217 = sbr.rel (0) target = $region17
    $region16: #{model0_forward.1} parent=1 // pred_region
      _
    $region17: #{model0_forward.1} parent=1 // pred_fallthru
      _
    // Predicated region
    $region18: #{model0_forward.1} parent=1 // pred_check
      _
    $region19: #{model0_forward.1} parent=1 // pred_check_branch
      %219 = sbr.rel (0) target = $region21
    $region20: #{model0_forward.1} parent=1 // pred_region
      _
    $region21: #{model0_forward.1} parent=1 // pred_fallthru
      _
    %220 = vsyncpa [#allocation3], 1

</llo_original>
